<compile_context>
chip_gen: v6e
topology: v6e:2x2x1
jax: 0.10.0
libtpu: 0.0.40
codegen_flags: <defaults>
</compile_context>

<pallas_src>
import jax
import jax.numpy as jnp
from jax.experimental import pallas as pl
from jax.experimental.pallas import tpu as pltpu


def _add_table_kernel(table_ref, x_ref, o_ref):
    # table_ref: (1, L*D) f32, VMEM-resident and shared across all grid steps.
    # x_ref / o_ref: (Bt, L*D) lane-dense block of the flattened input/output.
    o_ref[...] = (x_ref[...].astype(jnp.float32) + table_ref[...]).astype(o_ref.dtype)


def _sinusoid_table(pos_len, d_hid):
    """(pos_len, d_hid) f32 sinusoid table, one transcendental per element."""
    j = jnp.arange(d_hid)
    denom = 1.0 / jnp.power(10000.0, 2.0 * (j // 2).astype(jnp.float32) / d_hid)
    phase = jnp.where(j % 2 == 0, 0.0, jnp.pi / 2.0).astype(jnp.float32)
    pos = jnp.arange(pos_len, dtype=jnp.float32)[:, None]
    # cos(a) == sin(a + pi/2): even j -> phase 0 (sin), odd j -> phase pi/2 (cos)
    return jnp.sin(pos * denom[None, :] + phase[None, :])


def _pick_batch_tile(B, row_bytes, budget_bytes):
    """Largest batch tile whose x block stays under budget.

    The block's second-to-last dim must either equal B (full dim) or be a
    multiple of 8 that divides B (TPU (8, 128) block rule)."""
    if B * row_bytes <= budget_bytes:
        return B
    if B % 8 == 0:
        bt = min(B, max(8, (budget_bytes // max(row_bytes, 1)) // 8 * 8))
        while bt >= 8:
            if B % bt == 0:
                return bt
            bt -= 8
    # TODO(synk): B not tileable under the (8,128) sublane rule — fall back to a
    # single whole-batch block (always correct; may exceed the VMEM budget target).
    return B


def positional_encoding(x, n_position, d_hid):
    """x: (B, L, D) with L <= n_position, D == d_hid. Returns x + pos table."""
    B, L, D = x.shape
    assert D == d_hid and L <= n_position

    table = _sinusoid_table(L, d_hid).reshape(1, L * D)   # f32, computed once
    x2 = x.reshape(B, L * D)                              # lane-dense last dim

    row_bytes = L * D * x.dtype.itemsize
    bt = _pick_batch_tile(B, row_bytes, budget_bytes=2 * 1024 * 1024)
    grid = (B // bt,)

    out = pl.pallas_call(
        _add_table_kernel,
        out_shape=jax.ShapeDtypeStruct((B, L * D), x.dtype),
        grid_spec=pltpu.PrefetchScalarGridSpec(
            num_scalar_prefetch=0,
            grid=grid,
            in_specs=[
                # Constant block index -> table DMA'd once, resident across steps.
                pl.BlockSpec((1, L * D), lambda b: (0, 0)),
                pl.BlockSpec((bt, L * D), lambda b: (b, 0)),
            ],
            out_specs=pl.BlockSpec((bt, L * D), lambda b: (b, 0)),
        ),
        compiler_params=pltpu.CompilerParams(
            dimension_semantics=("parallel",),
            vmem_limit_bytes=32 * 1024 * 1024,
        ),
    )(table, x2)
    return out.reshape(B, L, D)


def _reference(x, n_position, d_hid):
    """Pure-JAX reference matching the PyTorch forward (explicit sin/cos select)."""
    j = jnp.arange(d_hid)
    denom = 1.0 / jnp.power(10000.0, 2.0 * (j // 2).astype(jnp.float32) / d_hid)
    pos = jnp.arange(n_position, dtype=jnp.float32)[:, None]
    tab = pos * denom[None, :]
    tab = jnp.where(j[None, :] % 2 == 0, jnp.sin(tab), jnp.cos(tab))
    return x + tab[None, : x.shape[1], :]


if __name__ == "__main__":
    # Module __init__ implies a position_table of shape (1, n_position, d_hid)
    n_position = 16
    d_hid = 32
    batch = 2
    pos_len = 8   # x.size(1) <= n_position

    key = jax.random.PRNGKey(0)
    x = jax.random.normal(key, (batch, pos_len, d_hid), dtype=jnp.float32)

    out = positional_encoding(x, n_position, d_hid)
    out = jax.block_until_ready(out)

    ref = _reference(x, n_position, d_hid)
    assert out.shape == x.shape and out.dtype == x.dtype
    assert jnp.allclose(out, ref, atol=1e-5, rtol=1e-5), "mismatch vs reference"

    print("KERNEL_OK")
</pallas_src>

<mosaic_0001>
module attributes {stable_mosaic.version = 11 : i64} {
  func.func @_add_table_kernel(%arg0: i32, %arg1: memref<1x256xf32, #tpu.memory_space<vmem>>, %arg2: memref<2x256xf32, #tpu.memory_space<vmem>>, %arg3: memref<2x256xf32, #tpu.memory_space<vmem>>) attributes {dimension_semantics = [#tpu.dimension_semantics<parallel>], iteration_bounds = array<i64: 1>, scalar_prefetch = 0 : i64, scratch_operands = 0 : i64, tpu.core_type = #tpu.core_type<tc>, window_params = [{pipeline_mode = #tpu.pipeline_mode<synchronous>, transform_indices = @transform_0, window_bounds = array<i64: 1, 256>}, {transform_indices = @transform_1, window_bounds = array<i64: 2, 256>}, {transform_indices = @transform_2, window_bounds = array<i64: 2, 256>}]} {
    %c0 = arith.constant 0 : index
    %c0_0 = arith.constant 0 : index
    %0 = vector.load %arg2[%c0, %c0_0] : memref<2x256xf32, #tpu.memory_space<vmem>>, vector<2x256xf32>
    %c0_1 = arith.constant 0 : index
    %c0_2 = arith.constant 0 : index
    %1 = vector.load %arg1[%c0_1, %c0_2] : memref<1x256xf32, #tpu.memory_space<vmem>>, vector<1x256xf32>
    %2 = vector.broadcast %1 : vector<1x256xf32> to vector<2x256xf32>
    %3 = arith.addf %0, %2 : vector<2x256xf32>
    %c0_3 = arith.constant 0 : index
    %c0_4 = arith.constant 0 : index
    %4 = vector.load %arg3[%c0_3, %c0_4] : memref<2x256xf32, #tpu.memory_space<vmem>>, vector<2x256xf32>
    tpu.vector_store %arg3[%c0_3, %c0_4], %3 {strides = array<i32>} : memref<2x256xf32, #tpu.memory_space<vmem>>, vector<2x256xf32>,
    return
  }
  func.func @transform_0(%arg0: i32) -> (i32, i32) {
    %c0_i32 = arith.constant 0 : i32
    %c0_i32_0 = arith.constant 0 : i32
    %c0_i32_1 = arith.constant 0 : i32
    return %c0_i32, %c0_i32_0 : i32, i32
  }
  func.func @transform_1(%arg0: i32) -> (i32, i32) {
    %c0_i32 = arith.constant 0 : i32
    %c0_i32_0 = arith.constant 0 : i32
    return %arg0, %c0_i32 : i32, i32
  }
  func.func @transform_2(%arg0: i32) -> (i32, i32) {
    %c0_i32 = arith.constant 0 : i32
    %c0_i32_0 = arith.constant 0 : i32
    return %arg0, %c0_i32 : i32, i32
  }
}

</mosaic_0001>

<llo_original>
// kernel: tpu_custom_call.1
$region0: #{tpu_custom_call.1}
  #allocation0 [shape = 'u32[]', space=smem, size = 0x4, offset = 0x4, fixed_abs, tag = 'smem constant byte address 0x4 - core index']
  #allocation1 [shape = 'u32[144,128]{1,0:T(1,128)}', space=vmem, size = 0x12000, scoped, tag = 'internal scratch']
  %s0 = inlined_call_operand.hbm [shape: f32[1,256], index: 0, kind: input, shape index: {}]
  %s1 = inlined_call_operand.hbm [shape: f32[2,256], index: 1, kind: input, shape index: {}]
  %s2 = inlined_call_operand.hbm [shape: f32[2,256], index: 2, kind: output, shape index: {}]
  %s3 = sld [smem:[#allocation0]]
  $region26: #{tpu_custom_call.1} parent=0
    _
  %s5 = ssub.s32 1, %s3
  %s6 = scalar_select 0, %s5, %s3
  $region1: #{tpu_custom_call.1} parent=0
    #allocation2 [shape = 'u8[1024]{0}', space=vmem, size = 0x400, scoped, tag = 'input window, operand 0, single buffered']
    #allocation3 [shape = 's32[1]{0}', space=sflag, size = 0x4, scoped, tag = 'scoped memory for tpu_custom_call.1']
    #allocation4 [shape = 's32[1]{0}', space=sflag, size = 0x4, scoped, tag = 'scoped memory for tpu_custom_call.1']
    #allocation5 [shape = 'u8[2048]{0}', space=vmem, size = 0x800, scoped, tag = 'input window, operand 1, single buffered']
    #allocation6 [shape = 's32[1]{0}', space=sflag, size = 0x4, scoped, tag = 'scoped memory for tpu_custom_call.1']
    #allocation7 [shape = 'u8[2048]{0}', space=vmem, size = 0x800, scoped, tag = 'output window, operand 0, single buffered']
    %7 = vsyncpa [#allocation3], 0
    %8 = vsyncpa [#allocation6], 0
    %9 = vsyncpa [#allocation4], 0
    // Predicated region
    $region2: #{tpu_custom_call.1} parent=1 // pred_check
      _
    $region3: #{tpu_custom_call.1} parent=1 // pred_check_branch
      %11 = sbr.rel (0) target = $region5
    $region4: #{tpu_custom_call.1} parent=1 // pred_region
      %s13 = ssub.s32 32, 32
      %14 = vsyncadd [#allocation3], %s13
      %s16 = sshll.u32 [#allocation2], 4
      %s17 = int_to_ptr.vmem [resolvable:$true] %s16
      %19 = dma.hbm_to_vmem [thread:$0]  %s0, 32, %s17, [#allocation3]
    $region5: #{tpu_custom_call.1} parent=1 // pred_fallthru
      _
    // Predicated region
    $region6: #{tpu_custom_call.1} parent=1 // pred_check
      _
    $region7: #{tpu_custom_call.1} parent=1 // pred_check_branch
      %21 = sbr.rel (0) target = $region9
    $region8: #{tpu_custom_call.1} parent=1 // pred_region
      %s23 = ssub.s32 64, 64
      %24 = vsyncadd [#allocation6], %s23
      %s26 = sshll.u32 [#allocation5], 4
      %s27 = int_to_ptr.vmem [resolvable:$true] %s26
      %29 = dma.hbm_to_vmem [thread:$0]  %s1, 64, %s27, [#allocation6]
    $region9: #{tpu_custom_call.1} parent=1 // pred_fallthru
      _
    // Predicated region
    $region10: #{tpu_custom_call.1} parent=1 // pred_check
      _
    $region11: #{tpu_custom_call.1} parent=1 // pred_check_branch
      %31 = sbr.rel (0) target = $region13
    $region12: #{tpu_custom_call.1} parent=1 // pred_region
      %32 = dma.done [#allocation3], 32
    $region13: #{tpu_custom_call.1} parent=1 // pred_fallthru
      _
    // Predicated region
    $region14: #{tpu_custom_call.1} parent=1 // pred_check
      _
    $region15: #{tpu_custom_call.1} parent=1 // pred_check_branch
      %34 = sbr.rel (0) target = $region17
    $region16: #{tpu_custom_call.1} parent=1 // pred_region
      %35 = dma.done [#allocation6], 64
    $region17: #{tpu_custom_call.1} parent=1 // pred_fallthru
      _
    %v36 = vld [vmem:[#allocation5] sm:$0xf]
    %v37 = vld [vmem:[#allocation2] sm:$0x3]
    %v39 = vlaneseq
    %v40 = vshrl.u32 %v39, 7
    %v41 = vsub.s32 0, %v40
    %v42 = vrot.slane %v37, %v41
    %v43 = vlaneseq
    %v44 = vshrl.u32 %v43, 7
    %v45 = vsub.s32 1, %v44
    %v46 = vrot.slane %v37, %v45
    %v47 = vcombine.low %v42, %v46
    %v49 = vunpack.c.l.s4 1983009808
    %v50 = vunpack.c.0.s8 %v49
    %v51 = vlaneseq
    %v52 = vshrl.u32 %v51, 7
    %v53 = vsub.s32 %v50, %v52
    %v54 = vrot.slane %v47, %v53
    %v56 = vadd.f32 %v36, %v54
    %57 = vst [vmem:[#allocation7] sm:$0xf] %v56
    // Predicated region
    $region18: #{tpu_custom_call.1} parent=1 // pred_check
      _
    $region19: #{tpu_custom_call.1} parent=1 // pred_check_branch
      %59 = sbr.rel (0) target = $region21
    $region20: #{tpu_custom_call.1} parent=1 // pred_region
      %s61 = ssub.s32 64, 64
      %62 = vsyncadd [#allocation4], %s61
      %s64 = sshll.u32 [#allocation7], 4
      %s65 = int_to_ptr.vmem [resolvable:$true] %s64
      %67 = dma.vmem_to_hbm [thread:$0]  %s65, 64, %s2, [#allocation4]
    $region21: #{tpu_custom_call.1} parent=1 // pred_fallthru
      _
    // Predicated region
    $region22: #{tpu_custom_call.1} parent=1 // pred_check
      _
    $region23: #{tpu_custom_call.1} parent=1 // pred_check_branch
      %69 = sbr.rel (0) target = $region25
    $region24: #{tpu_custom_call.1} parent=1 // pred_region
      %70 = dma.done [#allocation4], 64
    $region25: #{tpu_custom_call.1} parent=1 // pred_fallthru
      _
    %71 = vsyncpa [#allocation3], 1
    %72 = vsyncpa [#allocation6], 1
    %73 = vsyncpa [#allocation4], 1

</llo_original>
